<compile_context>
chip_gen: v6e
topology: v6e:2x2x1
jax: 0.10.0
libtpu: 0.0.40
codegen_flags: <defaults>
</compile_context>

<pallas_src>
import functools
import math

import jax
import jax.numpy as jnp
from jax.experimental import pallas as pl
from jax.experimental.pallas import tpu as pltpu


def normalize_kernel(true_h, eps, x_ref, gain_ref, bias_ref, out_ref):
    """One row-tile: per-row mean / unbiased std over lanes + affine."""
    x = x_ref[...].astype(jnp.float32)                           # [TN, H]

    inv_n = 1.0 / float(true_h)
    mu = jnp.sum(x, axis=-1, keepdims=True) * inv_n              # [TN, 1]

    diff = x - mu

    # torch.var default is unbiased: divide by (N - 1).
    inv_nm1 = 1.0 / float(max(true_h - 1, 1))
    var = jnp.sum(diff * diff, axis=-1, keepdims=True) * inv_nm1  # [TN, 1]
    sigma = jnp.sqrt(var + eps)                                   # EUP, per row

    # Per-row reciprocal ([TN,1]) instead of a full-width divide; exact
    # (approx=False) to keep tight tolerances.
    inv_sig = pl.reciprocal(sigma + eps, approx=False)            # [TN, 1]

    y = diff * inv_sig * gain_ref[...] + bias_ref[...]            # bcast [1,H]
    out_ref[...] = y.astype(out_ref.dtype)


def _pick_tile_rows(n_rows, h):
    """Adaptive row tile: big enough to approach HBM roofline, small enough
    that the double-buffered (2x in + 2x out) working set fits v7x VMEM,
    and capped at ~N/2 so the parallel grid keeps >= 2 steps."""
    if n_rows <= 8:
        return n_rows                      # full-dim block, always legal

    row_bytes = h * 4                      # budget conservatively in f32
    target_block_bytes = 4 * 1024 * 1024   # ~4 MiB per x block
    vmem_budget_bytes = 40 * 1024 * 1024   # 4 buffers must stay << 64 MiB (v7x)

    tn = min(target_block_bytes // row_bytes,
             vmem_budget_bytes // (4 * row_bytes))
    tn = max(8, (tn // 8) * 8)

    # Keep at least 2 grid steps for v7x megacore sharding.
    half = max(8, ((n_rows // 2) // 8) * 8)
    tn = min(tn, half)

    if tn >= n_rows:
        return n_rows
    return tn                              # < N, multiple of 8 -> legal block


def normalize_forward(x, gain, bias, epsilon=1e-6, dim=-1):
    """JAX wrapper mirroring Normalize.forward(x, dim)."""
    ndim = x.ndim
    axis = dim % ndim
    moved = axis != ndim - 1
    if moved:
        # TODO(synk): dim != -1 pays two extra HBM transpose passes; a
        # sublane-reduction kernel variant would avoid them (low priority).
        x = jnp.moveaxis(x, axis, -1)

    lead_shape = x.shape[:-1]
    H = x.shape[-1]
    N = int(math.prod(lead_shape)) if lead_shape else 1
    x2 = x.reshape(N, H)

    gain_f = gain.astype(jnp.float32).reshape(1, H)
    bias_f = bias.astype(jnp.float32).reshape(1, H)

    tn = _pick_tile_rows(N, H)
    grid = (pl.cdiv(N, tn),)

    # Derive the scoped-VMEM limit from the real working set (with headroom),
    # instead of a hard 32 MiB cap; stays under v7x's 64 MiB physical VMEM.
    block_bytes = tn * H * 4
    working_set = 4 * block_bytes + 2 * H * 4
    vmem_limit = int(min(100 * 1024 * 1024,
                         max(32 * 1024 * 1024, 2 * working_set)))

    kernel = functools.partial(normalize_kernel, H, float(epsilon))

    itemsize = jnp.dtype(x.dtype).itemsize
    out = pl.pallas_call(
        kernel,
        out_shape=jax.ShapeDtypeStruct((N, H), x.dtype),
        grid=grid,
        in_specs=[
            pl.BlockSpec((tn, H), lambda i: (i, 0)),   # x tile (streamed)
            pl.BlockSpec((1, H), lambda i: (0, 0)),    # gain (resident)
            pl.BlockSpec((1, H), lambda i: (0, 0)),    # bias (resident)
        ],
        out_specs=pl.BlockSpec((tn, H), lambda i: (i, 0)),
        compiler_params=pltpu.CompilerParams(
            dimension_semantics=("parallel",),
            vmem_limit_bytes=vmem_limit,
        ),
        cost_estimate=pl.CostEstimate(
            flops=7 * N * H,
            transcendentals=2 * N,
            bytes_accessed=2 * N * H * itemsize + 2 * H * 4,
        ),
    )(x2, gain_f, bias_f)

    out = out.reshape(lead_shape + (H,))
    if moved:
        out = jnp.moveaxis(out, -1, axis)
    return out


def _reference(x, gain, bias, epsilon=1e-6, dim=-1):
    """Pure-JAX reference of the torch module (unbiased variance)."""
    mu = jnp.mean(x, axis=dim, keepdims=True)
    var = jnp.var(x, axis=dim, keepdims=True, ddof=1)
    sigma = jnp.sqrt(var + epsilon)
    g, b = gain, bias
    if dim != -1:
        shape = [1] * x.ndim
        shape[dim] = gain.shape[0]
        g = gain.reshape(shape)
        b = bias.reshape(shape)
    return g * (x - mu) / (sigma + epsilon) + b


if __name__ == "__main__":
    key = jax.random.PRNGKey(0)

    # --- primary case: features = 128 (lane-dense fast path) ---------------
    B, S, H = 2, 16, 128
    k1, k2, k3, k4, k5, k6 = jax.random.split(key, 6)
    x = jax.random.normal(k1, (B, S, H), jnp.float32)
    gain = 1.0 + 0.1 * jax.random.normal(k2, (H,), jnp.float32)
    bias = 0.1 * jax.random.normal(k3, (H,), jnp.float32)

    out = normalize_forward(x, gain, bias, epsilon=1e-6, dim=-1)
    jax.block_until_ready(out)
    ref = _reference(x, gain, bias, epsilon=1e-6, dim=-1)
    assert out.shape == x.shape
    assert jnp.allclose(out, ref, atol=1e-4, rtol=1e-4), "mismatch (H=128 path)"

    # --- secondary case: features = 32 (non-128 feature dim, no padding) ---
    B2, S2, H2 = 3, 10, 32
    x2 = jax.random.normal(k4, (B2, S2, H2), jnp.float32)
    gain2 = 1.0 + 0.1 * jax.random.normal(k5, (H2,), jnp.float32)
    bias2 = 0.1 * jax.random.normal(k6, (H2,), jnp.float32)

    out2 = normalize_forward(x2, gain2, bias2, epsilon=1e-6, dim=-1)
    jax.block_until_ready(out2)
    ref2 = _reference(x2, gain2, bias2, epsilon=1e-6, dim=-1)
    assert out2.shape == x2.shape
    assert jnp.allclose(out2, ref2, atol=1e-4, rtol=1e-4), "mismatch (H=32 path)"

    print("KERNEL_OK")
</pallas_src>

<mosaic_0001>
module attributes {stable_mosaic.version = 11 : i64} {
  func.func @normalize_kernel(%arg0: i32, %arg1: memref<16x128xf32, #tpu.memory_space<vmem>>, %arg2: memref<1x128xf32, #tpu.memory_space<vmem>>, %arg3: memref<1x128xf32, #tpu.memory_space<vmem>>, %arg4: memref<16x128xf32, #tpu.memory_space<vmem>>) attributes {dimension_semantics = [#tpu.dimension_semantics<parallel>], iteration_bounds = array<i64: 2>, scalar_prefetch = 0 : i64, scratch_operands = 0 : i64, tpu.core_type = #tpu.core_type<tc>, window_params = [{transform_indices = @transform_0, window_bounds = array<i64: 16, 128>}, {pipeline_mode = #tpu.pipeline_mode<synchronous>, transform_indices = @transform_1, window_bounds = array<i64: 1, 128>}, {pipeline_mode = #tpu.pipeline_mode<synchronous>, transform_indices = @transform_2, window_bounds = array<i64: 1, 128>}, {transform_indices = @transform_3, window_bounds = array<i64: 16, 128>}]} {
    %c0 = arith.constant 0 : index
    %c0_0 = arith.constant 0 : index
    %0 = vector.load %arg1[%c0, %c0_0] : memref<16x128xf32, #tpu.memory_space<vmem>>, vector<16x128xf32>
    %cst = arith.constant dense<0.000000e+00> : vector<16xf32>
    %1 = vector.multi_reduction <add>, %0, %cst [1] : vector<16x128xf32> to vector<16xf32>
    %2 = vector.shape_cast %1 : vector<16xf32> to vector<16x1xf32>
    %cst_1 = arith.constant 7.812500e-03 : f32
    %3 = vector.broadcast %cst_1 : f32 to vector<16x1xf32>
    %4 = arith.mulf %2, %3 : vector<16x1xf32>
    %5 = vector.broadcast %4 : vector<16x1xf32> to vector<16x128xf32>
    %6 = arith.subf %0, %5 : vector<16x128xf32>
    %7 = arith.mulf %6, %6 : vector<16x128xf32>
    %cst_2 = arith.constant dense<0.000000e+00> : vector<16xf32>
    %8 = vector.multi_reduction <add>, %7, %cst_2 [1] : vector<16x128xf32> to vector<16xf32>
    %9 = vector.shape_cast %8 : vector<16xf32> to vector<16x1xf32>
    %cst_3 = arith.constant 0.00787401571 : f32
    %10 = vector.broadcast %cst_3 : f32 to vector<16x1xf32>
    %11 = arith.mulf %9, %10 : vector<16x1xf32>
    %cst_4 = arith.constant 9.99999997E-7 : f32
    %12 = vector.broadcast %cst_4 : f32 to vector<16x1xf32>
    %13 = arith.addf %11, %12 : vector<16x1xf32>
    %14 = math.sqrt %13 : vector<16x1xf32>
    %cst_5 = arith.constant 9.99999997E-7 : f32
    %15 = vector.broadcast %cst_5 : f32 to vector<16x1xf32>
    %16 = arith.addf %14, %15 : vector<16x1xf32>
    %17 = tpu.reciprocal %16 : vector<16x1xf32> -> vector<16x1xf32>
    %18 = vector.broadcast %17 : vector<16x1xf32> to vector<16x128xf32>
    %19 = arith.mulf %6, %18 : vector<16x128xf32>
    %c0_6 = arith.constant 0 : index
    %c0_7 = arith.constant 0 : index
    %20 = vector.load %arg2[%c0_6, %c0_7] : memref<1x128xf32, #tpu.memory_space<vmem>>, vector<1x128xf32>
    %21 = vector.broadcast %20 : vector<1x128xf32> to vector<16x128xf32>
    %22 = arith.mulf %19, %21 : vector<16x128xf32>
    %c0_8 = arith.constant 0 : index
    %c0_9 = arith.constant 0 : index
    %23 = vector.load %arg3[%c0_8, %c0_9] : memref<1x128xf32, #tpu.memory_space<vmem>>, vector<1x128xf32>
    %24 = vector.broadcast %23 : vector<1x128xf32> to vector<16x128xf32>
    %25 = arith.addf %22, %24 : vector<16x128xf32>
    %c0_10 = arith.constant 0 : index
    %c0_11 = arith.constant 0 : index
    %26 = vector.load %arg4[%c0_10, %c0_11] : memref<16x128xf32, #tpu.memory_space<vmem>>, vector<16x128xf32>
    tpu.vector_store %arg4[%c0_10, %c0_11], %25 {strides = array<i32>} : memref<16x128xf32, #tpu.memory_space<vmem>>, vector<16x128xf32>,
    return
  }
  func.func @transform_0(%arg0: i32) -> (i32, i32) {
    %c0_i32 = arith.constant 0 : i32
    %c0_i32_0 = arith.constant 0 : i32
    return %arg0, %c0_i32 : i32, i32
  }
  func.func @transform_1(%arg0: i32) -> (i32, i32) {
    %c0_i32 = arith.constant 0 : i32
    %c0_i32_0 = arith.constant 0 : i32
    %c0_i32_1 = arith.constant 0 : i32
    return %c0_i32, %c0_i32_0 : i32, i32
  }
  func.func @transform_2(%arg0: i32) -> (i32, i32) {
    %c0_i32 = arith.constant 0 : i32
    %c0_i32_0 = arith.constant 0 : i32
    %c0_i32_1 = arith.constant 0 : i32
    return %c0_i32, %c0_i32_0 : i32, i32
  }
  func.func @transform_3(%arg0: i32) -> (i32, i32) {
    %c0_i32 = arith.constant 0 : i32
    %c0_i32_0 = arith.constant 0 : i32
    return %arg0, %c0_i32 : i32, i32
  }
}

</mosaic_0001>

<llo_original>
// kernel: tpu_custom_call.1
$region0: #{tpu_custom_call.1}
  #allocation0 [shape = 'u32[]', space=smem, size = 0x4, offset = 0x4, fixed_abs, tag = 'smem constant byte address 0x4 - core index']
  #allocation1 [shape = 'u32[144,128]{1,0:T(1,128)}', space=vmem, size = 0x12000, scoped, tag = 'internal scratch']
  %s0 = inlined_call_operand.hbm [shape: f32[32,128], index: 0, kind: input, shape index: {}]
  %s1 = inlined_call_operand.vmem [shape: f32[1,128], index: 1, kind: input, shape index: {}]
  %s2 = inlined_call_operand.vmem [shape: f32[1,128], index: 2, kind: input, shape index: {}]
  %s3 = inlined_call_operand.hbm [shape: f32[32,128], index: 3, kind: output, shape index: {}]
  %s4 = sld [smem:[#allocation0]]
  $region49: #{tpu_custom_call.1} parent=0
    _
  %s6 = ssub.s32 1, %s4
  %s7 = scalar_select 0, %s6, %s4
  $region1: #{tpu_custom_call.1} parent=0
    #allocation2 [shape = 'u8[16384]{0}', space=vmem, size = 0x4000, scoped, tag = 'input window, operand 0']
    #allocation3 [shape = 's32[2]{0}', space=sflag, size = 0x8, scoped, tag = 'scoped memory for tpu_custom_call.1']
    #allocation4 [shape = 's32[2]{0}', space=sflag, size = 0x8, scoped, tag = 'scoped memory for tpu_custom_call.1']
    #allocation5 [shape = 'u8[16384]{0}', space=vmem, size = 0x4000, scoped, tag = 'output window, operand 0']
    %8 = vsyncpa [#allocation3], 0
    %s9 = scalar_lea.sflag [#allocation3], 1
    %10 = vsyncpa %s9, 0
    %11 = vsyncpa [#allocation4], 0
    %s12 = scalar_lea.sflag [#allocation4], 1
    %13 = vsyncpa %s12, 0
    loop: start=0, step=1, limit=4
    $region2: #{tpu_custom_call.1} parent=1 // loop_pre_header
      _
    $region3: #{tpu_custom_call.1} parent=1 // loop_header
      %s15 = sphi 0, %s19
      %p16 = scmp.ge.s32.totalorder %s15, 4
      %s25 = sphi 0, %s27
      %s28 = sphi 0, %s25
      %s29 = sphi 0, %s28
      %s45 = sphi 0, %s29
      %s49 = sphi 0, %s49
      %s51 = sphi 0, %s49
      %s52 = sphi 0, %s51
      %s66 = sphi 0, %s52
      %s70 = sphi 0, %s70
      %s72 = sphi 0, %s70
      %s73 = sphi 0, %s72
      %s87 = sphi 0, %s73
      %s93 = sphi 0, %s95
      %s96 = sphi 0, %s93
      %s97 = sphi 0, %s96
      %s113 = sphi 0, %s97
    $region4: #{tpu_custom_call.1} parent=1 // loop_header_branch
      %18 = sbr.rel (%p16) target = $region8
    $region5: #{tpu_custom_call.1} parent=1 // loop_body
      %s20 = ssub.s32 %s15, 1
      %s21 = ssub.s32 %s15, 2
      %s22 = sadd.s32 %s15, 1
      %s23 = ssub.s32 %s15, %s22
      %p24 = scmp.eq.s32.totalorder %s23, 0
      %s26 = sadd.s32 %s25, 1
      %s27 = scalar_select %p24, %s25, %s26
      %p30 = pneg %p24
      %p31 = scmp.eq.s32.totalorder %s15, 1
      %p32 = por %p30, %p31
      %p33 = scmp.ne.s32.totalorder %s25, %s28
      %p34 = scmp.eq.s32.totalorder %s15, 0
      %p35 = por %p33, %p34
      %p36 = scmp.ne.s32.totalorder %s25, %s28
      %p37 = scmp.eq.s32.totalorder %s20, 1
      %p38 = por %p36, %p37
      %p39 = scmp.ne.s32.totalorder %s28, %s29
      %p40 = scmp.eq.s32.totalorder %s20, 0
      %p41 = por %p39, %p40
      %p42 = scmp.ne.s32.totalorder %s28, %s29
      %p43 = scmp.eq.s32.totalorder %s21, 1
      %p44 = por %p42, %p43
      %p46 = scmp.ne.s32.totalorder %s29, %s45
      %p47 = scmp.eq.s32.totalorder %s21, 0
      %p48 = por %p46, %p47
      %s50 = sadd.s32 %s49, 1
      %p53 = scmp.eq.s32.totalorder %s15, 1
      %p54 = scmp.ne.s32.totalorder %s49, %s51
      %p55 = scmp.eq.s32.totalorder %s15, 0
      %p56 = por %p54, %p55
      %p57 = scmp.ne.s32.totalorder %s49, %s51
      %p58 = scmp.eq.s32.totalorder %s20, 1
      %p59 = por %p57, %p58
      %p60 = scmp.ne.s32.totalorder %s51, %s52
      %p61 = scmp.eq.s32.totalorder %s20, 0
      %p62 = por %p60, %p61
      %p63 = scmp.ne.s32.totalorder %s51, %s52
      %p64 = scmp.eq.s32.totalorder %s21, 1
      %p65 = por %p63, %p64
      %p67 = scmp.ne.s32.totalorder %s52, %s66
      %p68 = scmp.eq.s32.totalorder %s21, 0
      %p69 = por %p67, %p68
      %s71 = sadd.s32 %s70, 1
      %p74 = scmp.eq.s32.totalorder %s15, 1
      %p75 = scmp.ne.s32.totalorder %s70, %s72
      %p76 = scmp.eq.s32.totalorder %s15, 0
      %p77 = por %p75, %p76
      %p78 = scmp.ne.s32.totalorder %s70, %s72
      %p79 = scmp.eq.s32.totalorder %s20, 1
      %p80 = por %p78, %p79
      %p81 = scmp.ne.s32.totalorder %s72, %s73
      %p82 = scmp.eq.s32.totalorder %s20, 0
      %p83 = por %p81, %p82
      %p84 = scmp.ne.s32.totalorder %s72, %s73
      %p85 = scmp.eq.s32.totalorder %s21, 1
      %p86 = por %p84, %p85
      %p88 = scmp.ne.s32.totalorder %s73, %s87
      %p89 = scmp.eq.s32.totalorder %s21, 0
      %p90 = por %p88, %p89
      %s91 = ssub.s32 %s15, %s22
      %p92 = scmp.eq.s32.totalorder %s91, 0
      %s94 = sadd.s32 %s93, 1
      %s95 = scalar_select %p92, %s93, %s94
      %p98 = pneg %p92
      %p99 = scmp.eq.s32.totalorder %s15, 1
      %p100 = por %p98, %p99
      %p101 = scmp.ne.s32.totalorder %s93, %s96
      %p102 = scmp.eq.s32.totalorder %s15, 0
      %p103 = por %p101, %p102
      %p104 = scmp.ne.s32.totalorder %s93, %s96
      %p105 = scmp.eq.s32.totalorder %s20, 1
      %p106 = por %p104, %p105
      %p107 = scmp.ne.s32.totalorder %s96, %s97
      %p108 = scmp.eq.s32.totalorder %s20, 0
      %p109 = por %p107, %p108
      %p110 = scmp.ne.s32.totalorder %s96, %s97
      %p111 = scmp.eq.s32.totalorder %s21, 1
      %p112 = por %p110, %p111
      %p114 = scmp.ne.s32.totalorder %s97, %s113
      %p115 = scmp.eq.s32.totalorder %s21, 0
      %p116 = por %p114, %p115
      %p117 = scmp.le.s32.totalorder 1, %s15
      %p118 = scmp.lt.s32.totalorder %s15, 3
      %p119 = pnand %p117, %p118
      %p120 = pneg %p119
      // Predicated region
      $region9: #{tpu_custom_call.1} parent=5 // pred_check
        _
      $region10: #{tpu_custom_call.1} parent=5 // pred_check_branch
        %122 = sbr.rel (%p119) target = $region12
      $region11: #{tpu_custom_call.1} parent=5 // pred_region
        %s123 = ssub.s32 %s15, 1
        // Predicated region
        $region13: #{tpu_custom_call.1} parent=11 // pred_check
          %p124 = pneg %p62
        $region14: #{tpu_custom_call.1} parent=11 // pred_check_branch
          %126 = sbr.rel (%p124) target = $region16
        $region15: #{tpu_custom_call.1} parent=11 // pred_region
          _
        $region16: #{tpu_custom_call.1} parent=11 // pred_fallthru
          _
        // Predicated region
        $region17: #{tpu_custom_call.1} parent=11 // pred_check
          %p127 = pneg %p83
        $region18: #{tpu_custom_call.1} parent=11 // pred_check_branch
          %129 = sbr.rel (%p127) target = $region20
        $region19: #{tpu_custom_call.1} parent=11 // pred_region
          _
        $region20: #{tpu_custom_call.1} parent=11 // pred_fallthru
          _
      $region12: #{tpu_custom_call.1} parent=5 // pred_fallthru
        _
      %p130 = scmp.lt.s32.totalorder %s15, 2
      // Predicated region
      $region21: #{tpu_custom_call.1} parent=5 // pred_check
        %p131 = pneg %p130
      $region22: #{tpu_custom_call.1} parent=5 // pred_check_branch
        %133 = sbr.rel (%p131) target = $region24
      $region23: #{tpu_custom_call.1} parent=5 // pred_region
        // Predicated region
        $region25: #{tpu_custom_call.1} parent=23 // pred_check
          %p134 = pneg %p35
        $region26: #{tpu_custom_call.1} parent=23 // pred_check_branch
          %136 = sbr.rel (%p134) target = $region28
        $region27: #{tpu_custom_call.1} parent=23 // pred_region
          %s137 = sand.u32 %s25, 1
          %s138 = scalar_lea.sflag [#allocation3], %s137
          %s139 = sand.u32 %s25, 1
          %s140 = smul.addr %s139, 16
          %s141 = scalar_lea.vmem [#allocation2], %s140
          %s142 = smul.u32 2, %s15
          %s144 = ssub.s32 256, 256
          %145 = vsyncadd %s138, %s144
          %s146 = smul.addr %s142, 128
          %s147 = scalar_lea.hbm %s0, %s146
          %s148 = sshll.u32 %s141, 4
          %s149 = int_to_ptr.vmem [resolvable:$true] %s148
          %154 = dma.hbm_to_vmem [thread:$0]  %s147, 256, %s149, %s138, 128, 128, 8
        $region28: #{tpu_custom_call.1} parent=23 // pred_fallthru
          _
      $region24: #{tpu_custom_call.1} parent=5 // pred_fallthru
        _
      %p155 = scmp.le.s32.totalorder 1, %s15
      %p156 = scmp.lt.s32.totalorder %s15, 3
      %p157 = pnand %p155, %p156
      %p158 = pneg %p157
      // Predicated region
      $region29: #{tpu_custom_call.1} parent=5 // pred_check
        _
      $region30: #{tpu_custom_call.1} parent=5 // pred_check_branch
        %160 = sbr.rel (%p157) target = $region32
      $region31: #{tpu_custom_call.1} parent=5 // pred_region
        %s161 = ssub.s32 %s15, 1
        %s162 = sand.u32 %s28, 1
        %s163 = scalar_lea.sflag [#allocation3], %s162
        %s164 = sand.u32 %s28, 1
        %s165 = smul.addr %s164, 16
        %s166 = scalar_lea.vmem [#allocation2], %s165
        // Predicated region
        $region33: #{tpu_custom_call.1} parent=31 // pred_check
          %p167 = pneg %p41
        $region34: #{tpu_custom_call.1} parent=31 // pred_check_branch
          %169 = sbr.rel (%p167) target = $region36
        $region35: #{tpu_custom_call.1} parent=31 // pred_region
          %170 = dma.done %s163, 256
        $region36: #{tpu_custom_call.1} parent=31 // pred_fallthru
          _
        %s171 = sand.u32 %s28, 1
        %s172 = scalar_lea.sflag [#allocation3], %s171
        %s173 = sand.u32 %s28, 1
        %s174 = smul.addr %s173, 16
        %s175 = scalar_lea.vmem [#allocation2], %s174
        %p176 = pneg %p41
        %p177 = pneg %p38
        %p178 = pneg %p62
        %p179 = pneg %p59
        %p180 = pneg %p83
        %p181 = pneg %p80
        %p182 = pneg %p109
        %p183 = pneg %p106
        %s184 = sand.u32 %s96, 1
        %s185 = scalar_lea.sflag [#allocation4], %s184
        %s186 = sand.u32 %s96, 1
        %s187 = smul.addr %s186, 16
        %s188 = scalar_lea.vmem [#allocation5], %s187
        %s189 = smul.u32 2, %s20
        %s190 = smul.u32 2, %s20
        %v191 = vld [vmem:[%s166] sm:$0xff]
        %v192 = vld [vmem:[%s166 + $0x8] sm:$0xff]
        %193 = vadd.xlane.f32.xlu0 %v191
        %v194 = vpop.xlane.xlu0 %193
        %195 = vadd.xlane.f32.xlu0 %v192
        %v196 = vpop.xlane.xlu0 %195
        %v197 = vmul.f32 %v194, 0.0078125
        %v198 = vmul.f32 %v196, 0.0078125
        %v199 = vsub.f32 %v191, %v197
        %v200 = vsub.f32 %v192, %v198
        %v201 = vmul.f32 %v199, %v199
        %v202 = vmul.f32 %v200, %v200
        %203 = vadd.xlane.f32.xlu0 %v201
        %v204 = vpop.xlane.xlu0 %203
        %205 = vadd.xlane.f32.xlu0 %v202
        %v206 = vpop.xlane.xlu0 %205
        %v207 = vmul.f32 %v204, 0.007874016
        %v208 = vmul.f32 %v206, 0.007874016
        %v209 = vadd.f32 %v207, 1e-06
        %v210 = vadd.f32 %v208, 1e-06
        %v211 = vrsqrt.pop %v209
        %v212 = vmul.f32 %v209, %v211
        %vm213 = vcmp.eq.f32.partialorder %v209, inf
        %v214 = vsel %vm213, %v209, %v212
        %vm215 = vcmp.eq.f32.partialorder %v209, 0.0
        %v216 = vand.u32 %v209, 2147483648
        %v217 = vsel %vm215, %v216, %v214
        %v218 = vrsqrt.pop %v210
        %v219 = vmul.f32 %v210, %v218
        %vm220 = vcmp.eq.f32.partialorder %v210, inf
        %v221 = vsel %vm220, %v210, %v219
        %vm222 = vcmp.eq.f32.partialorder %v210, 0.0
        %v223 = vand.u32 %v210, 2147483648
        %v224 = vsel %vm222, %v223, %v221
        %v225 = vadd.f32 %v217, 1e-06
        %v226 = vadd.f32 %v224, 1e-06
        %v227 = vrcp.pop %v225
        %v228 = vrcp.pop %v226
        %v229 = vmul.f32 %v199, %v227
        %v230 = vmul.f32 %v200, %v228
        %v231 = vld [vmem:[%s1] sm:$0x1]
        %v233 = vlaneseq
        %v234 = vshrl.u32 %v233, 7
        %v235 = vsub.s32 0, %v234
        %v236 = vrot.slane %v231, %v235
        %v238 = vmul.f32 %v229, %v236
        %v239 = vmul.f32 %v230, %v236
        %v240 = vld [vmem:[%s2] sm:$0x1]
        %v242 = vlaneseq
        %v243 = vshrl.u32 %v242, 7
        %v244 = vsub.s32 0, %v243
        %v245 = vrot.slane %v240, %v244
        %v247 = vadd.f32 %v238, %v245
        %v248 = vadd.f32 %v239, %v245
        %249 = vst [vmem:[%s188] sm:$0xff] %v247
        %250 = vst [vmem:[%s188 + $0x8] sm:$0xff] %v248
        %s251 = sand.u32 %s96, 1
        %s252 = scalar_lea.sflag [#allocation4], %s251
        %s253 = sand.u32 %s96, 1
        %s254 = smul.addr %s253, 16
        %s255 = scalar_lea.vmem [#allocation5], %s254
        // Predicated region
        $region37: #{tpu_custom_call.1} parent=31 // pred_check
          %p256 = pneg %p106
        $region38: #{tpu_custom_call.1} parent=31 // pred_check_branch
          %258 = sbr.rel (%p256) target = $region40
        $region39: #{tpu_custom_call.1} parent=31 // pred_region
          %s259 = smul.u32 2, %s20
          %s261 = ssub.s32 256, 256
          %262 = vsyncadd %s252, %s261
          %s263 = smul.addr %s259, 128
          %s264 = scalar_lea.hbm %s3, %s263
          %s265 = sshll.u32 %s255, 4
          %s266 = int_to_ptr.vmem [resolvable:$true] %s265
          %271 = dma.vmem_to_hbm [thread:$0]  %s266, 256, %s264, %s252, 128, 128, 8
        $region40: #{tpu_custom_call.1} parent=31 // pred_fallthru
          _
      $region32: #{tpu_custom_call.1} parent=5 // pred_fallthru
        _
      %p272 = scmp.le.s32.totalorder 2, %s15
      // Predicated region
      $region41: #{tpu_custom_call.1} parent=5 // pred_check
        %p273 = pneg %p272
      $region42: #{tpu_custom_call.1} parent=5 // pred_check_branch
        %275 = sbr.rel (%p273) target = $region44
      $region43: #{tpu_custom_call.1} parent=5 // pred_region
        %s276 = ssub.s32 %s15, 2
        // Predicated region
        $region45: #{tpu_custom_call.1} parent=43 // pred_check
          %p277 = pneg %p112
        $region46: #{tpu_custom_call.1} parent=43 // pred_check_branch
          %279 = sbr.rel (%p277) target = $region48
        $region47: #{tpu_custom_call.1} parent=43 // pred_region
          %s280 = sand.u32 %s97, 1
          %s281 = scalar_lea.sflag [#allocation4], %s280
          %s282 = sand.u32 %s97, 1
          %s283 = smul.addr %s282, 16
          %s284 = scalar_lea.vmem [#allocation5], %s283
          %285 = dma.done %s281, 256
        $region48: #{tpu_custom_call.1} parent=43 // pred_fallthru
          _
      $region44: #{tpu_custom_call.1} parent=5 // pred_fallthru
        _
    $region6: #{tpu_custom_call.1} parent=1 // loop_footer
      %s19 = sadd.s32 1, %s15
    $region7: #{tpu_custom_call.1} parent=1 // loop_footer_branch
      %14 = sbr.rel target = $region3
    $region8: #{tpu_custom_call.1} parent=1 // loop_exit
      _
    %286 = vsyncpa [#allocation3], 1
    %s287 = scalar_lea.sflag [#allocation3], 1
    %288 = vsyncpa %s287, 1
    %289 = vsyncpa [#allocation4], 1
    %s290 = scalar_lea.sflag [#allocation4], 1
    %291 = vsyncpa %s290, 1

</llo_original>
